<compile_context>
chip_gen: v6e
topology: v6e:2x2x1
jax: 0.10.0
libtpu: 0.0.40
codegen_flags: <defaults>
</compile_context>

<pallas_src>
import functools

import numpy as np
import jax
import jax.numpy as jnp
from jax import lax
from jax.experimental import pallas as pl
from jax.experimental.pallas import tpu as pltpu


def _shift_down(z):
    """out[:, j, :] = z[:, j-1, :], zero at j == 0."""
    return jnp.concatenate([jnp.zeros_like(z[:, :1, :]), z[:, :-1, :]], axis=1)


def _shift_up(z):
    """out[:, j, :] = z[:, j+1, :], zero at j == L-1."""
    return jnp.concatenate([z[:, 1:, :], jnp.zeros_like(z[:, :1, :])], axis=1)


def _basic_block_kernel(*refs, stride, equal_in_out):
    if equal_in_out:
        (x_ref, w1_ref, w2_ref, s1_ref, b1_ref, s2_ref, b2_ref, o_ref) = refs
        ws_ref = None
    else:
        (x_ref, w1_ref, w2_ref, ws_ref, s1_ref, b1_ref, s2_ref, b2_ref, o_ref) = refs

    B, l_out, sc_dim = x_ref.shape
    cin = sc_dim // stride
    cout = o_ref.shape[2]
    M = B * l_out

    x_r = x_ref[...]                                          # (B, L/s, s*Cin) f32

    # BN1 (inference, folded scale/bias) + ReLU1 — applied to all phases at once.
    h = jnp.maximum(x_r * s1_ref[...] + b1_ref[...], 0.0)

    # ---- conv1 taps built in registers (no padded scratch, no strided loads) ----
    # output j reads input s*j-1 (tap0), s*j (tap1), s*j+1 (tap2)
    if stride == 1:
        tap1 = h
        tap0 = _shift_down(h)
        tap2 = _shift_up(h)
    else:
        tap1 = h[:, :, :cin]                                  # phase 0  -> x[s*j]
        tap2 = h[:, :, cin:2 * cin]                           # phase 1  -> x[s*j+1]
        phase_last = h[:, :, (stride - 1) * cin:]             # x[s*j + s - 1]
        tap0 = _shift_down(phase_last)                        # x[s*j - 1]

    # ---- conv1: fused im2col matmul, K = 3*Cin, bf16 on the MXU ----
    t1 = jnp.concatenate([tap0, tap1, tap2], axis=-1)         # (B, L/s, 3*Cin)
    t1 = t1.reshape(M, 3 * cin).astype(jnp.bfloat16)
    c1 = jnp.dot(t1, w1_ref[...], preferred_element_type=jnp.float32)   # (M, Cout)

    # BN2 (inference) + ReLU2.
    # TODO(synk): training-mode dropout (droprate > 0) / training-mode BN not implemented.
    g = jnp.maximum(c1 * s2_ref[...] + b2_ref[...], 0.0)
    g3 = g.reshape(B, l_out, cout)

    # ---- conv2: kernel 3, stride 1 — fused im2col matmul, K = 3*Cout ----
    t2 = jnp.concatenate([_shift_down(g3), g3, _shift_up(g3)], axis=-1)
    t2 = t2.reshape(M, 3 * cout).astype(jnp.bfloat16)
    c2 = jnp.dot(t2, w2_ref[...], preferred_element_type=jnp.float32)   # (M, Cout)

    # ---- shortcut ----
    if equal_in_out:
        sc = x_r.reshape(M, cout)                             # identity (stride == 1)
    else:
        # 1x1 strided conv of relu(bn1(x)) == centre tap (phase 0), already built.
        sc = jnp.dot(tap1.reshape(M, cin).astype(jnp.bfloat16), ws_ref[...],
                     preferred_element_type=jnp.float32)

    o_ref[...] = (sc + c2).reshape(B, l_out, cout).astype(o_ref.dtype)


def _pick_batch_tile(N, l_out, cin, cout, stride, vmem_budget=8 * 1024 * 1024):
    """Largest divisor of N whose working set stays well under the VMEM budget
    (budget kept conservative so the same tiling also fits v7x's 64 MiB VMEM)."""
    per_sample = l_out * (stride * cin * 4 * 2 +      # x block (double-buffered, f32)
                          3 * cin * 2 + 3 * cout * 2 +  # im2col slabs (bf16)
                          cout * 4 * 3 +                # c1 / g / c2 (f32)
                          cout * 4 * 2)                 # out block (double-buffered, f32)
    bt = max(1, min(N, vmem_budget // max(per_sample, 1)))
    while N % bt:
        bt -= 1
    return bt


def basic_block_forward(x_ncl, params, *, stride, equal_in_out, b_tile=None):
    """x_ncl: (N, Cin, L) float32 (PyTorch layout). Returns (N, Cout, L//stride)."""
    N, cin, L = x_ncl.shape
    cout = params["w1"].shape[0]
    assert L % stride == 0, "kernel requires L divisible by stride"
    l_out = L // stride
    if equal_in_out:
        assert cin == cout and stride == 1, \
            "identity shortcut requires matching shapes (same as PyTorch)"

    # Channels-last; stride phases folded into the lane axis (free reshape).
    # TODO(synk): in a full WideResNet keep the whole net channels-last and hoist
    # these transposes / BN folds out of the per-block wrapper (one-time work).
    x = jnp.transpose(x_ncl, (0, 2, 1)).astype(jnp.float32)    # (N, L, Cin)
    x_r = x.reshape(N, l_out, stride * cin)

    eps = 1e-5
    s1 = params["bn1_gamma"] / jnp.sqrt(params["bn1_var"] + eps)
    b1 = params["bn1_beta"] - params["bn1_mean"] * s1
    s2 = params["bn2_gamma"] / jnp.sqrt(params["bn2_var"] + eps)
    b2 = params["bn2_beta"] - params["bn2_mean"] * s2
    s1_t = jnp.tile(s1.reshape(1, cin), (1, stride)).astype(jnp.float32)
    b1_t = jnp.tile(b1.reshape(1, cin), (1, stride)).astype(jnp.float32)
    s2 = s2.reshape(1, cout).astype(jnp.float32)
    b2 = b2.reshape(1, cout).astype(jnp.float32)

    # Conv weights: PyTorch (Cout, Cin, K) -> (K, Cin, Cout) -> (K*Cin, Cout), bf16.
    w1 = jnp.transpose(params["w1"], (2, 1, 0)).reshape(3 * cin, cout).astype(jnp.bfloat16)
    w2 = jnp.transpose(params["w2"], (2, 1, 0)).reshape(3 * cout, cout).astype(jnp.bfloat16)

    if b_tile is None:
        b_tile = _pick_batch_tile(N, l_out, cin, cout, stride)
    assert N % b_tile == 0
    grid = (N // b_tile,)

    inputs = [x_r, w1, w2]
    in_specs = [
        pl.BlockSpec((b_tile, l_out, stride * cin), lambda n: (n, 0, 0)),
        pl.BlockSpec((3 * cin, cout), lambda n: (0, 0)),
        pl.BlockSpec((3 * cout, cout), lambda n: (0, 0)),
    ]
    if not equal_in_out:
        ws = jnp.transpose(params["ws"][:, :, 0], (1, 0)).astype(jnp.bfloat16)  # (Cin, Cout)
        inputs.append(ws)
        in_specs.append(pl.BlockSpec((cin, cout), lambda n: (0, 0)))
    inputs += [s1_t, b1_t, s2, b2]
    in_specs += [
        pl.BlockSpec((1, stride * cin), lambda n: (0, 0)),
        pl.BlockSpec((1, stride * cin), lambda n: (0, 0)),
        pl.BlockSpec((1, cout), lambda n: (0, 0)),
        pl.BlockSpec((1, cout), lambda n: (0, 0)),
    ]

    kernel = functools.partial(_basic_block_kernel, stride=stride,
                               equal_in_out=equal_in_out)

    out = pl.pallas_call(
        kernel,
        out_shape=jax.ShapeDtypeStruct((N, l_out, cout), jnp.float32),
        grid_spec=pltpu.PrefetchScalarGridSpec(
            num_scalar_prefetch=0,
            grid=grid,
            in_specs=in_specs,
            out_specs=pl.BlockSpec((b_tile, l_out, cout), lambda n: (n, 0, 0)),
        ),
        compiler_params=pltpu.CompilerParams(
            # batch tiles are independent -> shard across TensorCores on v7x
            dimension_semantics=("parallel",)),
    )(*inputs)

    return jnp.transpose(out, (0, 2, 1))                       # (N, Cout, L_out)


def reference_forward(x, params, *, stride, equal_in_out):
    """Pure-JAX reference in PyTorch (N, C, L) layout, inference-mode BN, f32."""
    eps = 1e-5

    def bn(z, g, b, m, v):
        return (z - m[None, :, None]) / jnp.sqrt(v[None, :, None] + eps) \
            * g[None, :, None] + b[None, :, None]

    def conv1d(z, w, s, p):
        return lax.conv_general_dilated(
            z, w, window_strides=(s,), padding=[(p, p)],
            dimension_numbers=("NCH", "OIH", "NCH"))

    h = jax.nn.relu(bn(x, params["bn1_gamma"], params["bn1_beta"],
                       params["bn1_mean"], params["bn1_var"]))
    out = conv1d(h, params["w1"], stride, 1)
    out = jax.nn.relu(bn(out, params["bn2_gamma"], params["bn2_beta"],
                         params["bn2_mean"], params["bn2_var"]))
    out = conv1d(out, params["w2"], 1, 1)
    sc = x if equal_in_out else conv1d(h, params["ws"], stride, 0)
    return sc + out


def _make_params(key, cin, cout):
    ks = jax.random.split(key, 12)
    return {
        "bn1_gamma": 1.0 + 0.1 * jax.random.normal(ks[0], (cin,), jnp.float32),
        "bn1_beta": 0.1 * jax.random.normal(ks[1], (cin,), jnp.float32),
        "bn1_mean": 0.1 * jax.random.normal(ks[2], (cin,), jnp.float32),
        "bn1_var": 1.0 + 0.1 * jnp.abs(jax.random.normal(ks[3], (cin,), jnp.float32)),
        "w1": 0.2 * jax.random.normal(ks[4], (cout, cin, 3), jnp.float32),
        "bn2_gamma": 1.0 + 0.1 * jax.random.normal(ks[5], (cout,), jnp.float32),
        "bn2_beta": 0.1 * jax.random.normal(ks[6], (cout,), jnp.float32),
        "bn2_mean": 0.1 * jax.random.normal(ks[7], (cout,), jnp.float32),
        "bn2_var": 1.0 + 0.1 * jnp.abs(jax.random.normal(ks[8], (cout,), jnp.float32)),
        "w2": 0.2 * jax.random.normal(ks[9], (cout, cout, 3), jnp.float32),
        "ws": 0.2 * jax.random.normal(ks[10], (cout, cin, 1), jnp.float32),
    }


if __name__ == "__main__":
    key = jax.random.PRNGKey(0)
    k_a, k_b, k_xa, k_xb = jax.random.split(key, 4)

    # Config A: downsampling block — BasicBlock(in_planes=4, out_planes=8, stride=2).
    N, CIN, COUT, L, STRIDE = 2, 4, 8, 16, 2
    params_a = _make_params(k_a, CIN, COUT)
    x_a = jax.random.normal(k_xa, (N, CIN, L), jnp.float32)
    out_a = jax.block_until_ready(
        basic_block_forward(x_a, params_a, stride=STRIDE, equal_in_out=False))
    ref_a = reference_forward(x_a, params_a, stride=STRIDE, equal_in_out=False)
    np.testing.assert_allclose(np.asarray(out_a), np.asarray(ref_a),
                               rtol=3e-2, atol=3e-2)

    # Config B: identity block — BasicBlock(in_planes=8, out_planes=8, stride=1).
    CIN_B = COUT_B = 8
    params_b = _make_params(k_b, CIN_B, COUT_B)
    x_b = jax.random.normal(k_xb, (N, CIN_B, L), jnp.float32)
    out_b = jax.block_until_ready(
        basic_block_forward(x_b, params_b, stride=1, equal_in_out=True))
    ref_b = reference_forward(x_b, params_b, stride=1, equal_in_out=True)
    np.testing.assert_allclose(np.asarray(out_b), np.asarray(ref_b),
                               rtol=3e-2, atol=3e-2)

    print("KERNEL_OK")
</pallas_src>

<mosaic_0001>
module attributes {stable_mosaic.version = 11 : i64} {
  func.func @_basic_block_kernel(%arg0: i32, %arg1: memref<2x8x8xf32, #tpu.memory_space<vmem>>, %arg2: memref<12x8xbf16, #tpu.memory_space<vmem>>, %arg3: memref<24x8xbf16, #tpu.memory_space<vmem>>, %arg4: memref<4x8xbf16, #tpu.memory_space<vmem>>, %arg5: memref<1x8xf32, #tpu.memory_space<vmem>>, %arg6: memref<1x8xf32, #tpu.memory_space<vmem>>, %arg7: memref<1x8xf32, #tpu.memory_space<vmem>>, %arg8: memref<1x8xf32, #tpu.memory_space<vmem>>, %arg9: memref<2x8x8xf32, #tpu.memory_space<vmem>>) attributes {dimension_semantics = [#tpu.dimension_semantics<parallel>], iteration_bounds = array<i64: 1>, scalar_prefetch = 0 : i64, scratch_operands = 0 : i64, tpu.core_type = #tpu.core_type<tc>, window_params = [{transform_indices = @transform_0, window_bounds = array<i64: 2, 8, 8>}, {pipeline_mode = #tpu.pipeline_mode<synchronous>, transform_indices = @transform_1, window_bounds = array<i64: 12, 8>}, {pipeline_mode = #tpu.pipeline_mode<synchronous>, transform_indices = @transform_2, window_bounds = array<i64: 24, 8>}, {pipeline_mode = #tpu.pipeline_mode<synchronous>, transform_indices = @transform_3, window_bounds = array<i64: 4, 8>}, {pipeline_mode = #tpu.pipeline_mode<synchronous>, transform_indices = @transform_4, window_bounds = array<i64: 1, 8>}, {pipeline_mode = #tpu.pipeline_mode<synchronous>, transform_indices = @transform_5, window_bounds = array<i64: 1, 8>}, {pipeline_mode = #tpu.pipeline_mode<synchronous>, transform_indices = @transform_6, window_bounds = array<i64: 1, 8>}, {pipeline_mode = #tpu.pipeline_mode<synchronous>, transform_indices = @transform_7, window_bounds = array<i64: 1, 8>}, {transform_indices = @transform_8, window_bounds = array<i64: 2, 8, 8>}]} {
    %c0 = arith.constant 0 : index
    %c0_0 = arith.constant 0 : index
    %c0_1 = arith.constant 0 : index
    %0 = vector.load %arg1[%c0, %c0_0, %c0_1] : memref<2x8x8xf32, #tpu.memory_space<vmem>>, vector<2x8x8xf32>
    %c0_2 = arith.constant 0 : index
    %c0_3 = arith.constant 0 : index
    %1 = vector.load %arg5[%c0_2, %c0_3] : memref<1x8xf32, #tpu.memory_space<vmem>>, vector<1x8xf32>
    %2 = vector.shape_cast %1 : vector<1x8xf32> to vector<1x1x8xf32>
    %3 = vector.broadcast %2 : vector<1x1x8xf32> to vector<2x8x8xf32>
    %4 = arith.mulf %0, %3 : vector<2x8x8xf32>
    %c0_4 = arith.constant 0 : index
    %c0_5 = arith.constant 0 : index
    %5 = vector.load %arg6[%c0_4, %c0_5] : memref<1x8xf32, #tpu.memory_space<vmem>>, vector<1x8xf32>
    %6 = vector.shape_cast %5 : vector<1x8xf32> to vector<1x1x8xf32>
    %7 = vector.broadcast %6 : vector<1x1x8xf32> to vector<2x8x8xf32>
    %8 = arith.addf %4, %7 : vector<2x8x8xf32>
    %cst = arith.constant 0.000000e+00 : f32
    %9 = vector.broadcast %cst : f32 to vector<2x8x8xf32>
    %10 = arith.maximumf %8, %9 : vector<2x8x8xf32>
    %11 = vector.extract_strided_slice %10 {offsets = [0, 0, 0], sizes = [2, 8, 4], strides = [1, 1, 1]} : vector<2x8x8xf32> to vector<2x8x4xf32>
    %12 = vector.extract_strided_slice %10 {offsets = [0, 0, 4], sizes = [2, 8, 4], strides = [1, 1, 1]} : vector<2x8x8xf32> to vector<2x8x4xf32>
    %13 = vector.extract_strided_slice %10 {offsets = [0, 0, 4], sizes = [2, 8, 4], strides = [1, 1, 1]} : vector<2x8x8xf32> to vector<2x8x4xf32>
    %cst_6 = arith.constant 0.000000e+00 : f32
    %14 = vector.broadcast %cst_6 : f32 to vector<2x1x4xf32>
    %15 = vector.extract_strided_slice %13 {offsets = [0, 0, 0], sizes = [2, 7, 4], strides = [1, 1, 1]} : vector<2x8x4xf32> to vector<2x7x4xf32>
    %16 = tpu.concatenate %14, %15 in 1 : vector<2x1x4xf32>, vector<2x7x4xf32> -> vector<2x8x4xf32>
    %17 = tpu.concatenate %16, %11, %12 in 2 : vector<2x8x4xf32>, vector<2x8x4xf32>, vector<2x8x4xf32> -> vector<2x8x12xf32>
    %18 = vector.shape_cast %17 : vector<2x8x12xf32> to vector<16x12xf32>
    %19 = arith.truncf %18 : vector<16x12xf32> to vector<16x12xbf16>
    %c0_7 = arith.constant 0 : index
    %c0_8 = arith.constant 0 : index
    %20 = vector.load %arg2[%c0_7, %c0_8] : memref<12x8xbf16, #tpu.memory_space<vmem>>, vector<12x8xbf16>
    %cst_9 = arith.constant dense<0.000000e+00> : vector<16x8xf32>
    %21 = tpu.matmul %19, %20, %cst_9 {dimension_numbers = #tpu.dot_dimension_numbers<[1], [0], [0], [1], [0, 0, 1, 1], [], []>} : vector<16x12xbf16>, vector<12x8xbf16>, vector<16x8xf32> -> vector<16x8xf32>
    %c0_10 = arith.constant 0 : index
    %c0_11 = arith.constant 0 : index
    %22 = vector.load %arg7[%c0_10, %c0_11] : memref<1x8xf32, #tpu.memory_space<vmem>>, vector<1x8xf32>
    %23 = vector.broadcast %22 : vector<1x8xf32> to vector<16x8xf32>
    %24 = arith.mulf %21, %23 : vector<16x8xf32>
    %c0_12 = arith.constant 0 : index
    %c0_13 = arith.constant 0 : index
    %25 = vector.load %arg8[%c0_12, %c0_13] : memref<1x8xf32, #tpu.memory_space<vmem>>, vector<1x8xf32>
    %26 = vector.broadcast %25 : vector<1x8xf32> to vector<16x8xf32>
    %27 = arith.addf %24, %26 : vector<16x8xf32>
    %cst_14 = arith.constant 0.000000e+00 : f32
    %28 = vector.broadcast %cst_14 : f32 to vector<16x8xf32>
    %29 = arith.maximumf %27, %28 : vector<16x8xf32>
    %30 = vector.shape_cast %29 : vector<16x8xf32> to vector<2x8x8xf32>
    %cst_15 = arith.constant 0.000000e+00 : f32
    %31 = vector.broadcast %cst_15 : f32 to vector<2x1x8xf32>
    %32 = vector.extract_strided_slice %30 {offsets = [0, 0, 0], sizes = [2, 7, 8], strides = [1, 1, 1]} : vector<2x8x8xf32> to vector<2x7x8xf32>
    %33 = tpu.concatenate %31, %32 in 1 : vector<2x1x8xf32>, vector<2x7x8xf32> -> vector<2x8x8xf32>
    %34 = vector.extract_strided_slice %30 {offsets = [0, 1, 0], sizes = [2, 7, 8], strides = [1, 1, 1]} : vector<2x8x8xf32> to vector<2x7x8xf32>
    %cst_16 = arith.constant 0.000000e+00 : f32
    %35 = vector.broadcast %cst_16 : f32 to vector<2x1x8xf32>
    %36 = tpu.concatenate %34, %35 in 1 : vector<2x7x8xf32>, vector<2x1x8xf32> -> vector<2x8x8xf32>
    %37 = tpu.concatenate %33, %30, %36 in 2 : vector<2x8x8xf32>, vector<2x8x8xf32>, vector<2x8x8xf32> -> vector<2x8x24xf32>
    %38 = vector.shape_cast %37 : vector<2x8x24xf32> to vector<16x24xf32>
    %39 = arith.truncf %38 : vector<16x24xf32> to vector<16x24xbf16>
    %c0_17 = arith.constant 0 : index
    %c0_18 = arith.constant 0 : index
    %40 = vector.load %arg3[%c0_17, %c0_18] : memref<24x8xbf16, #tpu.memory_space<vmem>>, vector<24x8xbf16>
    %cst_19 = arith.constant dense<0.000000e+00> : vector<16x8xf32>
    %41 = tpu.matmul %39, %40, %cst_19 {dimension_numbers = #tpu.dot_dimension_numbers<[1], [0], [0], [1], [0, 0, 1, 1], [], []>} : vector<16x24xbf16>, vector<24x8xbf16>, vector<16x8xf32> -> vector<16x8xf32>
    %42 = vector.shape_cast %11 : vector<2x8x4xf32> to vector<16x4xf32>
    %43 = arith.truncf %42 : vector<16x4xf32> to vector<16x4xbf16>
    %c0_20 = arith.constant 0 : index
    %c0_21 = arith.constant 0 : index
    %44 = vector.load %arg4[%c0_20, %c0_21] : memref<4x8xbf16, #tpu.memory_space<vmem>>, vector<4x8xbf16>
    %cst_22 = arith.constant dense<0.000000e+00> : vector<16x8xf32>
    %45 = tpu.matmul %43, %44, %cst_22 {dimension_numbers = #tpu.dot_dimension_numbers<[1], [0], [0], [1], [0, 0, 1, 1], [], []>} : vector<16x4xbf16>, vector<4x8xbf16>, vector<16x8xf32> -> vector<16x8xf32>
    %46 = arith.addf %45, %41 : vector<16x8xf32>
    %47 = vector.shape_cast %46 : vector<16x8xf32> to vector<2x8x8xf32>
    %c0_23 = arith.constant 0 : index
    %c0_24 = arith.constant 0 : index
    %c0_25 = arith.constant 0 : index
    %48 = vector.load %arg9[%c0_23, %c0_24, %c0_25] : memref<2x8x8xf32, #tpu.memory_space<vmem>>, vector<2x8x8xf32>
    tpu.vector_store %arg9[%c0_23, %c0_24, %c0_25], %47 {strides = array<i32>} : memref<2x8x8xf32, #tpu.memory_space<vmem>>, vector<2x8x8xf32>,
    return
  }
  func.func @transform_0(%arg0: i32) -> (i32, i32, i32) {
    %c0_i32 = arith.constant 0 : i32
    %c0_i32_0 = arith.constant 0 : i32
    %c0_i32_1 = arith.constant 0 : i32
    return %arg0, %c0_i32, %c0_i32_0 : i32, i32, i32
  }
  func.func @transform_1(%arg0: i32) -> (i32, i32) {
    %c0_i32 = arith.constant 0 : i32
    %c0_i32_0 = arith.constant 0 : i32
    %c0_i32_1 = arith.constant 0 : i32
    return %c0_i32, %c0_i32_0 : i32, i32
  }
  func.func @transform_2(%arg0: i32) -> (i32, i32) {
    %c0_i32 = arith.constant 0 : i32
    %c0_i32_0 = arith.constant 0 : i32
    %c0_i32_1 = arith.constant 0 : i32
    return %c0_i32, %c0_i32_0 : i32, i32
  }
  func.func @transform_3(%arg0: i32) -> (i32, i32) {
    %c0_i32 = arith.constant 0 : i32
    %c0_i32_0 = arith.constant 0 : i32
    %c0_i32_1 = arith.constant 0 : i32
    return %c0_i32, %c0_i32_0 : i32, i32
  }
  func.func @transform_4(%arg0: i32) -> (i32, i32) {
    %c0_i32 = arith.constant 0 : i32
    %c0_i32_0 = arith.constant 0 : i32
    %c0_i32_1 = arith.constant 0 : i32
    return %c0_i32, %c0_i32_0 : i32, i32
  }
  func.func @transform_5(%arg0: i32) -> (i32, i32) {
    %c0_i32 = arith.constant 0 : i32
    %c0_i32_0 = arith.constant 0 : i32
    %c0_i32_1 = arith.constant 0 : i32
    return %c0_i32, %c0_i32_0 : i32, i32
  }
  func.func @transform_6(%arg0: i32) -> (i32, i32) {
    %c0_i32 = arith.constant 0 : i32
    %c0_i32_0 = arith.constant 0 : i32
    %c0_i32_1 = arith.constant 0 : i32
    return %c0_i32, %c0_i32_0 : i32, i32
  }
  func.func @transform_7(%arg0: i32) -> (i32, i32) {
    %c0_i32 = arith.constant 0 : i32
    %c0_i32_0 = arith.constant 0 : i32
    %c0_i32_1 = arith.constant 0 : i32
    return %c0_i32, %c0_i32_0 : i32, i32
  }
  func.func @transform_8(%arg0: i32) -> (i32, i32, i32) {
    %c0_i32 = arith.constant 0 : i32
    %c0_i32_0 = arith.constant 0 : i32
    %c0_i32_1 = arith.constant 0 : i32
    return %arg0, %c0_i32, %c0_i32_0 : i32, i32, i32
  }
}

</mosaic_0001>

<llo_original>
// kernel: tpu_custom_call.1
$region0: #{tpu_custom_call.1}
  #allocation0 [shape = 'u32[]', space=smem, size = 0x4, offset = 0x4, fixed_abs, tag = 'smem constant byte address 0x4 - core index']
  #allocation1 [shape = 'u32[144,128]{1,0:T(1,128)}', space=vmem, size = 0x12000, scoped, tag = 'internal scratch']
  %s0 = inlined_call_operand.vmem [shape: f32[2,8,8], index: 0, kind: input, shape index: {}]
  %s1 = inlined_call_operand.vmem [shape: bf16[12,8], index: 1, kind: input, shape index: {}]
  %s2 = inlined_call_operand.vmem [shape: bf16[24,8], index: 2, kind: input, shape index: {}]
  %s3 = inlined_call_operand.vmem [shape: bf16[4,8], index: 3, kind: input, shape index: {}]
  %s4 = inlined_call_operand.vmem [shape: f32[1,8], index: 4, kind: input, shape index: {}]
  %s5 = inlined_call_operand.vmem [shape: f32[1,8], index: 5, kind: input, shape index: {}]
  %s6 = inlined_call_operand.vmem [shape: f32[1,8], index: 6, kind: input, shape index: {}]
  %s7 = inlined_call_operand.vmem [shape: f32[1,8], index: 7, kind: input, shape index: {}]
  %s8 = inlined_call_operand.hbm [shape: f32[2,8,8], index: 8, kind: output, shape index: {}]
  %s9 = sld [smem:[#allocation0]]
  $region42: #{tpu_custom_call.1} parent=0
    _
  %s11 = ssub.s32 1, %s9
  %s12 = scalar_select 0, %s11, %s9
  $region1: #{tpu_custom_call.1} parent=0
    #allocation2 [shape = 'u8[8192]{0}', space=vmem, size = 0x2000, scoped, tag = 'output window, operand 0, single buffered']
    #allocation3 [shape = 's32[1]{0}', space=sflag, size = 0x4, scoped, tag = 'scoped memory for tpu_custom_call.1']
    %13 = vsyncpa [#allocation3], 0
    // Predicated region
    $region2: #{tpu_custom_call.1} parent=1 // pred_check
      _
    $region3: #{tpu_custom_call.1} parent=1 // pred_check_branch
      %15 = sbr.rel (0) target = $region5
    $region4: #{tpu_custom_call.1} parent=1 // pred_region
      _
    $region5: #{tpu_custom_call.1} parent=1 // pred_fallthru
      _
    // Predicated region
    $region6: #{tpu_custom_call.1} parent=1 // pred_check
      _
    $region7: #{tpu_custom_call.1} parent=1 // pred_check_branch
      %17 = sbr.rel (0) target = $region9
    $region8: #{tpu_custom_call.1} parent=1 // pred_region
      _
    $region9: #{tpu_custom_call.1} parent=1 // pred_fallthru
      _
    // Predicated region
    $region10: #{tpu_custom_call.1} parent=1 // pred_check
      _
    $region11: #{tpu_custom_call.1} parent=1 // pred_check_branch
      %19 = sbr.rel (0) target = $region13
    $region12: #{tpu_custom_call.1} parent=1 // pred_region
      _
    $region13: #{tpu_custom_call.1} parent=1 // pred_fallthru
      _
    // Predicated region
    $region14: #{tpu_custom_call.1} parent=1 // pred_check
      _
    $region15: #{tpu_custom_call.1} parent=1 // pred_check_branch
      %21 = sbr.rel (0) target = $region17
    $region16: #{tpu_custom_call.1} parent=1 // pred_region
      _
    $region17: #{tpu_custom_call.1} parent=1 // pred_fallthru
      _
    // Predicated region
    $region18: #{tpu_custom_call.1} parent=1 // pred_check
      _
    $region19: #{tpu_custom_call.1} parent=1 // pred_check_branch
      %23 = sbr.rel (0) target = $region21
    $region20: #{tpu_custom_call.1} parent=1 // pred_region
      _
    $region21: #{tpu_custom_call.1} parent=1 // pred_fallthru
      _
    // Predicated region
    $region22: #{tpu_custom_call.1} parent=1 // pred_check
      _
    $region23: #{tpu_custom_call.1} parent=1 // pred_check_branch
      %25 = sbr.rel (0) target = $region25
    $region24: #{tpu_custom_call.1} parent=1 // pred_region
      _
    $region25: #{tpu_custom_call.1} parent=1 // pred_fallthru
      _
    // Predicated region
    $region26: #{tpu_custom_call.1} parent=1 // pred_check
      _
    $region27: #{tpu_custom_call.1} parent=1 // pred_check_branch
      %27 = sbr.rel (0) target = $region29
    $region28: #{tpu_custom_call.1} parent=1 // pred_region
      _
    $region29: #{tpu_custom_call.1} parent=1 // pred_fallthru
      _
    // Predicated region
    $region30: #{tpu_custom_call.1} parent=1 // pred_check
      _
    $region31: #{tpu_custom_call.1} parent=1 // pred_check_branch
      %29 = sbr.rel (0) target = $region33
    $region32: #{tpu_custom_call.1} parent=1 // pred_region
      _
    $region33: #{tpu_custom_call.1} parent=1 // pred_fallthru
      _
    %v31 = vld [vmem:[%s0] sm:$0xff]
    %v32 = vld [vmem:[%s0 + $0x8] sm:$0xff]
    %v33 = vld [vmem:[%s4] sm:$0x1]
    %v35 = vlaneseq
    %v36 = vshrl.u32 %v35, 7
    %v37 = vsub.s32 0, %v36
    %v38 = vrot.slane %v33, %v37
    %v40 = vmul.f32 %v31, %v38
    %v41 = vmul.f32 %v32, %v38
    %v42 = vld [vmem:[%s5] sm:$0x1]
    %v44 = vlaneseq
    %v45 = vshrl.u32 %v44, 7
    %v46 = vsub.s32 0, %v45
    %v47 = vrot.slane %v42, %v46
    %v49 = vadd.f32 %v40, %v47
    %v50 = vadd.f32 %v41, %v47
    %v51 = vmax.f32 %v49, 0.0
    %v52 = vmax.f32 %v50, 0.0
    %v55 = vrot.slane %v51, 7
    %v56 = vrot.slane %v52, 7
    %57 = vrot.lane.b32.xlu0 %v55, 124
    %v58 = vpop.permute.xlu0 %57
    %59 = vrot.lane.b32.xlu0 %v56, 124
    %v60 = vpop.permute.xlu0 %59
    %vm63 = vcmask 1040384
    %v64 = vsel %vm63, 0.0, %v58
    %v65 = vsel %vm63, 0.0, %v60
    %66 = vrot.lane.b32.xlu0 %v51, 4
    %v67 = vpop.permute.xlu0 %66
    %68 = vrot.lane.b32.xlu0 %v52, 4
    %v69 = vpop.permute.xlu0 %68
    %vm72 = vcmask 31744
    %v73 = vsel %vm72, %v64, %v67
    %v74 = vsel %vm72, %v65, %v69
    %vm75 = vcmask 64512
    %v76 = vsel %vm75, %v73, %v67
    %v77 = vsel %vm75, %v74, %v69
    %v78 = vpack.c.bf16 %v77, %v76
    %v79 = vld [vmem:[%s1] sm:$0xf]
    %v80 = vld [vmem:[%s1 + $0x4] sm:$0x3]
    %v83 = vunpack.c.l.b16 %v79
    %v84 = vunpack.c.l.b16 %v80
    %v85 = vpack.c.b16 %v84, %v83
    %vm86 = vcmask 97280
    %v88 = vsel %vm86, %v78, 0
    %vm90 = vcmask 1045504
    %v92 = vsel %vm90, %v85, 0
    %94 = vmatprep.subr.bf16.mxu0 0
    %95 = vmatpush1.bf16.msra.mxu0 0
    %96 = vmatprep.subr.bf16.mxu0 0
    %97 = vmatpush1.bf16.msra.mxu0 0
    %98 = vmatprep.subr.bf16.mxu0 0
    %99 = vmatpush1.bf16.msra.mxu0 0
    %100 = vmatprep.subr.bf16.mxu0 0
    %101 = vmatpush1.bf16.msra.mxu0 0
    %102 = vmatprep.subr.bf16.mxu0 0
    %103 = vmatpush1.bf16.msra.mxu0 0
    %104 = vmatprep.subr.bf16.mxu0 0
    %105 = vmatpush1.bf16.msra.mxu0 0
    %106 = vmatprep.subr.bf16.mxu0 0
    %107 = vmatpush1.bf16.msra.mxu0 0
    %108 = vmatprep.subr.bf16.mxu0 0
    %109 = vmatpush1.bf16.msra.mxu0 %v92
    %110 = vmatprep.subr.bf16.mxu0 0
    %111 = vmatpush2.bf16.msra.mxu0 0
    %112 = vmatprep.subr.bf16.mxu0 0
    %113 = vmatpush2.bf16.msra.mxu0 0
    %114 = vmatprep.subr.bf16.mxu0 0
    %115 = vmatpush2.bf16.msra.mxu0 0
    %116 = vmatprep.subr.bf16.mxu0 0
    %117 = vmatpush2.bf16.msra.mxu0 0
    %118 = vmatprep.subr.bf16.mxu0 0
    %119 = vmatpush2.bf16.msra.mxu0 0
    %120 = vmatprep.subr.bf16.mxu0 0
    %121 = vmatpush2.bf16.msra.mxu0 0
    %122 = vmatprep.subr.bf16.mxu0 0
    %123 = vmatpush2.bf16.msra.mxu0 0
    %124 = vmatprep.subr.bf16.mxu0 0
    %125 = vmatpush2.bf16.msra.mxu0 0
    %126 = vmatprep.mubr.bf16.mxu0 0
    %127 = vmatmul.mubr.bf16.gmra.mxu0 %v88
    %v128 = vpop.f32.mrf.mxu0
    %v129 = vadd.f32 0.0, %v128
    %v130 = vpop.f32.mrf.mxu0
    %v131 = vpop.f32.mrf.mxu0
    %v132 = vadd.f32 0.0, %v131
    %v133 = vpop.f32.mrf.mxu0
    %134 = vdwg.mxu0
    %v135 = vld [vmem:[%s6] sm:$0x1]
    %v137 = vlaneseq
    %v138 = vshrl.u32 %v137, 7
    %v139 = vsub.s32 0, %v138
    %v140 = vrot.slane %v135, %v139
    %v142 = vmul.f32 %v129, %v140
    %v143 = vmul.f32 %v132, %v140
    %v144 = vld [vmem:[%s7] sm:$0x1]
    %v146 = vlaneseq
    %v147 = vshrl.u32 %v146, 7
    %v148 = vsub.s32 0, %v147
    %v149 = vrot.slane %v144, %v148
    %v151 = vadd.f32 %v142, %v149
    %v152 = vadd.f32 %v143, %v149
    %v153 = vmax.f32 %v151, 0.0
    %v154 = vmax.f32 %v152, 0.0
    %v157 = vrot.slane %v153, 7
    %v158 = vrot.slane %v154, 7
    %v161 = vsel %vm63, 0.0, %v157
    %v162 = vsel %vm63, 0.0, %v158
    %v163 = vrot.slane %v153, 1
    %v164 = vrot.slane %v154, 1
    %vm167 = vcmask 1046528
    %v168 = vsel %vm167, %v163, 0.0
    %v169 = vsel %vm167, %v164, 0.0
    %170 = vrot.lane.b32.xlu0 %v153, 8
    %v171 = vpop.permute.xlu0 %170
    %172 = vrot.lane.b32.xlu0 %v154, 8
    %v173 = vpop.permute.xlu0 %172
    %178 = vrot.lane.b32.xlu0 %v168, 16
    %v179 = vpop.permute.xlu0 %178
    %180 = vrot.lane.b32.xlu0 %v169, 16
    %v181 = vpop.permute.xlu0 %180
    %v184 = vsel %vm75, %v161, %v171
    %v185 = vsel %vm75, %v162, %v173
    %vm186 = vcmask 130048
    %v187 = vsel %vm186, %v184, %v179
    %v188 = vsel %vm186, %v185, %v181
    %v189 = vpack.c.bf16 %v188, %v187
    %v190 = vld [vmem:[%s2] sm:$0xf]
    %v191 = vld [vmem:[%s2 + $0x4] sm:$0xf]
    %v192 = vld [vmem:[%s2 + $0x8] sm:$0xf]
    %v196 = vunpack.c.l.b16 %v190
    %v197 = vunpack.c.l.b16 %v191
    %v198 = vunpack.c.l.b16 %v192
    %v199 = vpack.c.b16 %v197, %v196
    %v200 = vpack.c.b16 %v198, %v198
    %vm202 = vcmask 195584
    %v204 = vsel %vm202, %v189, 0
    %vm206 = vcmask 1043456
    %v208 = vsel %vm206, %v200, 0
    %210 = vmatprep.subr.bf16.mxu0 0
    %211 = vmatpush1.bf16.msra.mxu0 0
    %212 = vmatprep.subr.bf16.mxu0 0
    %213 = vmatpush1.bf16.msra.mxu0 0
    %214 = vmatprep.subr.bf16.mxu0 0
    %215 = vmatpush1.bf16.msra.mxu0 0
    %216 = vmatprep.subr.bf16.mxu0 0
    %217 = vmatpush1.bf16.msra.mxu0 0
    %218 = vmatprep.subr.bf16.mxu0 0
    %219 = vmatpush1.bf16.msra.mxu0 0
    %220 = vmatprep.subr.bf16.mxu0 0
    %221 = vmatpush1.bf16.msra.mxu0 0
    %222 = vmatprep.subr.bf16.mxu0 0
    %223 = vmatpush1.bf16.msra.mxu0 %v208
    %224 = vmatprep.subr.bf16.mxu0 0
    %225 = vmatpush1.bf16.msra.mxu0 %v199
    %226 = vmatprep.subr.bf16.mxu0 0
    %227 = vmatpush2.bf16.msra.mxu0 0
    %228 = vmatprep.subr.bf16.mxu0 0
    %229 = vmatpush2.bf16.msra.mxu0 0
    %230 = vmatprep.subr.bf16.mxu0 0
    %231 = vmatpush2.bf16.msra.mxu0 0
    %232 = vmatprep.subr.bf16.mxu0 0
    %233 = vmatpush2.bf16.msra.mxu0 0
    %234 = vmatprep.subr.bf16.mxu0 0
    %235 = vmatpush2.bf16.msra.mxu0 0
    %236 = vmatprep.subr.bf16.mxu0 0
    %237 = vmatpush2.bf16.msra.mxu0 0
    %238 = vmatprep.subr.bf16.mxu0 0
    %239 = vmatpush2.bf16.msra.mxu0 0
    %240 = vmatprep.subr.bf16.mxu0 0
    %241 = vmatpush2.bf16.msra.mxu0 0
    %242 = vmatprep.mubr.bf16.mxu0 0
    %243 = vmatmul.mubr.bf16.gmra.mxu0 %v204
    %v244 = vpop.f32.mrf.mxu0
    %v245 = vadd.f32 0.0, %v244
    %v246 = vpop.f32.mrf.mxu0
    %v247 = vpop.f32.mrf.mxu0
    %v248 = vadd.f32 0.0, %v247
    %v249 = vpop.f32.mrf.mxu0
    %250 = vdwg.mxu0
    %v251 = vpack.c.bf16 %v52, %v51
    %v252 = vld [vmem:[%s3] sm:$0x3]
    %v254 = vsel %vm72, %v251, 0
    %vm256 = vcmask 1041408
    %v258 = vsel %vm256, %v252, 0
    %260 = vmatprep.subr.bf16.mxu0 0
    %261 = vmatpush1.bf16.msra.mxu0 0
    %262 = vmatprep.subr.bf16.mxu0 0
    %263 = vmatpush1.bf16.msra.mxu0 0
    %264 = vmatprep.subr.bf16.mxu0 0
    %265 = vmatpush1.bf16.msra.mxu0 0
    %266 = vmatprep.subr.bf16.mxu0 0
    %267 = vmatpush1.bf16.msra.mxu0 0
    %268 = vmatprep.subr.bf16.mxu0 0
    %269 = vmatpush1.bf16.msra.mxu0 0
    %270 = vmatprep.subr.bf16.mxu0 0
    %271 = vmatpush1.bf16.msra.mxu0 0
    %272 = vmatprep.subr.bf16.mxu0 0
    %273 = vmatpush1.bf16.msra.mxu0 0
    %274 = vmatprep.subr.bf16.mxu0 0
    %275 = vmatpush1.bf16.msra.mxu0 %v258
    %276 = vmatprep.subr.bf16.mxu0 0
    %277 = vmatpush2.bf16.msra.mxu0 0
    %278 = vmatprep.subr.bf16.mxu0 0
    %279 = vmatpush2.bf16.msra.mxu0 0
    %280 = vmatprep.subr.bf16.mxu0 0
    %281 = vmatpush2.bf16.msra.mxu0 0
    %282 = vmatprep.subr.bf16.mxu0 0
    %283 = vmatpush2.bf16.msra.mxu0 0
    %284 = vmatprep.subr.bf16.mxu0 0
    %285 = vmatpush2.bf16.msra.mxu0 0
    %286 = vmatprep.subr.bf16.mxu0 0
    %287 = vmatpush2.bf16.msra.mxu0 0
    %288 = vmatprep.subr.bf16.mxu0 0
    %289 = vmatpush2.bf16.msra.mxu0 0
    %290 = vmatprep.subr.bf16.mxu0 0
    %291 = vmatpush2.bf16.msra.mxu0 0
    %292 = vmatprep.mubr.bf16.mxu0 0
    %293 = vmatmul.mubr.bf16.gmra.mxu0 %v254
    %v294 = vpop.f32.mrf.mxu0
    %v295 = vadd.f32 %v245, %v294
    %v296 = vpop.f32.mrf.mxu0
    %v297 = vpop.f32.mrf.mxu0
    %v298 = vadd.f32 %v248, %v297
    %v299 = vpop.f32.mrf.mxu0
    %300 = vdwg.mxu0
    %301 = vst.msk [vmem:[#allocation2] sm:$0xff] %vm75, %v295
    %302 = vst.msk [vmem:[#allocation2 + $0x8] sm:$0xff] %vm75, %v298
    // Predicated region
    $region34: #{tpu_custom_call.1} parent=1 // pred_check
      _
    $region35: #{tpu_custom_call.1} parent=1 // pred_check_branch
      %304 = sbr.rel (0) target = $region37
    $region36: #{tpu_custom_call.1} parent=1 // pred_region
      %s306 = ssub.s32 256, 256
      %307 = vsyncadd [#allocation3], %s306
      %s308 = sshll.u32 [#allocation2], 4
      %s309 = int_to_ptr.vmem [resolvable:$true] %s308
      %314 = dma.vmem_to_hbm [thread:$0]  %s309, 256, %s8, [#allocation3], 128, 128, 8
    $region37: #{tpu_custom_call.1} parent=1 // pred_fallthru
      _
    // Predicated region
    $region38: #{tpu_custom_call.1} parent=1 // pred_check
      _
    $region39: #{tpu_custom_call.1} parent=1 // pred_check_branch
      %316 = sbr.rel (0) target = $region41
    $region40: #{tpu_custom_call.1} parent=1 // pred_region
      %317 = dma.done [#allocation3], 256
    $region41: #{tpu_custom_call.1} parent=1 // pred_fallthru
      _
    %318 = vsyncpa [#allocation3], 1

</llo_original>
